<compile_context>
chip_gen: v7x
topology: tpu7x:2x2x1
jax: 0.10.0
libtpu: 0.0.40
codegen_flags: <defaults>
</compile_context>

<pallas_src>
import functools

import jax
import jax.numpy as jnp
from jax.experimental import pallas as pl
from jax.experimental.pallas import tpu as pltpu

LANES = 128
MAX_TILE_ROWS = 1024      # (1024, 128) f32 tile = 512 KiB, only for big pairs


def _fused_dice_kernel(pair_ids_ref, blk_ids_ref,
                       p0_ref, t0_ref, p1_ref, t1_ref, p2_ref, t2_ref,
                       num0_ref, den0_ref, num1_ref, den1_ref,
                       num2_ref, den2_ref,
                       *, rows, tile_rows):
    i = pl.program_id(0)
    pair = pair_ids_ref[i]      # which (prediction, target) pair this block is
    blk = blk_ids_ref[i]        # local block index within that pair

    in_refs = ((p0_ref, t0_ref), (p1_ref, t1_ref), (p2_ref, t2_ref))
    out_refs = ((num0_ref, den0_ref), (num1_ref, den1_ref),
                (num2_ref, den2_ref))

    # Outputs use a constant block index, so they stay resident in VMEM for
    # the whole grid; zero them once on the first step.
    @pl.when(i == 0)
    def _():
        for n_ref, d_ref in out_refs:
            n_ref[...] = jnp.zeros_like(n_ref)
            d_ref[...] = jnp.zeros_like(d_ref)

    def accumulate(j):
        p_ref, t_ref = in_refs[j]
        num_ref, den_ref = out_refs[j]
        p = p_ref[...].astype(jnp.float32)
        t = t_ref[...].astype(jnp.float32)
        if rows[j] % tile_rows[j] != 0:
            # This pair has a ragged last block: mask BEFORE the sigmoid so
            # garbage rows can never leak into the sums.
            row = jax.lax.broadcasted_iota(jnp.int32, p.shape, 0)
            valid = (blk * tile_rows[j] + row) < rows[j]
            p = jnp.where(valid, p, 0.0)
            t = jnp.where(valid, t, 0.0)
            sig = jnp.where(valid, jax.nn.sigmoid(p), 0.0)
        else:
            # Fast path: every block of this pair is full, no mask needed.
            sig = jax.nn.sigmoid(p)
        # Collapse the tile to a single lane-dense (1, 128) partial sum and
        # accumulate into the resident output block.
        num_ref[...] += (sig * t).sum(axis=0, keepdims=True)
        den_ref[...] += (sig + t).sum(axis=0, keepdims=True)

    for j in range(3):
        if rows[j] > 0:   # pairs with no full lane-rows never appear in schedule
            pl.when(pair == j)(functools.partial(accumulate, j))


def _pair_main_and_tail(p, t):
    """Flatten a pair into a lane-dense (rows, 128) view plus a JAX tail."""
    pf = jnp.reshape(p, (-1,))
    tf = jnp.reshape(t, (-1,))
    n = pf.shape[0]
    rows = n // LANES
    main_n = rows * LANES
    if rows > 0:
        p2 = pf[:main_n].reshape(rows, LANES)
        t2 = tf[:main_n].reshape(rows, LANES)
    else:
        # Dummy block keeps the pallas_call signature fixed; this pair is never
        # scheduled and contributes only through the JAX tail below.
        p2 = jnp.zeros((1, LANES), pf.dtype)
        t2 = jnp.zeros((1, LANES), tf.dtype)
    if main_n < n:
        tp = pf[main_n:].astype(jnp.float32)
        tt = tf[main_n:].astype(jnp.float32)
        sig = jax.nn.sigmoid(tp)
        tail_num = jnp.sum(sig * tt)
        tail_den = jnp.sum(sig) + jnp.sum(tt)
    else:
        tail_num = jnp.float32(0.0)
        tail_den = jnp.float32(0.0)
    return p2, t2, rows, tail_num, tail_den


def _dice_sums_fused(pairs):
    """pairs: [(pred, tgt)] * 3 -> (num[3], den[3]) with
       num[j] = sum(sigmoid(p_j) * t_j), den[j] = sum(sigmoid(p_j)) + sum(t_j)."""
    mains, rows, tails_num, tails_den = [], [], [], []
    for p, t in pairs:
        p2, t2, r, tn, td = _pair_main_and_tail(p, t)
        mains.append((p2, t2))
        rows.append(r)
        tails_num.append(tn)
        tails_den.append(td)

    tail_num = jnp.stack(tails_num)
    tail_den = jnp.stack(tails_den)

    # Tile rows sized to the data: full-extent block for small pairs,
    # (1024, 128) tiles only for large ones.
    tile_rows = tuple(min(max(r, 1), MAX_TILE_ROWS) for r in rows)
    nblocks = tuple(pl.cdiv(r, tr) if r > 0 else 0
                    for r, tr in zip(rows, tile_rows))
    total_blocks = sum(nblocks)

    if total_blocks == 0:
        # Every pair has < 128 elements: everything already handled in JAX.
        return tail_num, tail_den

    # Static block schedule (all blocks of pair 0, then pair 1, then pair 2),
    # scalar-prefetched into SMEM and consumed by the index_maps + kernel.
    pair_ids, blk_ids = [], []
    for j, nb in enumerate(nblocks):
        pair_ids += [j] * nb
        blk_ids += list(range(nb))
    pair_ids = jnp.asarray(pair_ids, dtype=jnp.int32)
    blk_ids = jnp.asarray(blk_ids, dtype=jnp.int32)

    def make_in_map(j):
        def idx(i, pair_ref, blk_ref):
            # Freeze at block 0 while other pairs are being processed so the
            # block index does not change -> no redundant DMA is issued.
            return (jnp.where(pair_ref[i] == j, blk_ref[i], 0), 0)
        return idx

    in_specs = []
    for j, _ in enumerate(mains):
        spec = pl.BlockSpec((tile_rows[j], LANES), make_in_map(j))
        in_specs += [spec, spec]

    out_spec = pl.BlockSpec((1, LANES), lambda i, pair_ref, blk_ref: (0, 0))
    acc_shape = jax.ShapeDtypeStruct((1, LANES), jnp.float32)

    kernel = functools.partial(_fused_dice_kernel,
                               rows=tuple(rows), tile_rows=tile_rows)

    total_main = sum(r * LANES for r in rows)
    bytes_in = sum(p2.size * p2.dtype.itemsize + t2.size * t2.dtype.itemsize
                   for p2, t2 in mains)
    cost = pl.CostEstimate(flops=6 * total_main,
                           transcendentals=total_main,
                           bytes_accessed=bytes_in + 6 * LANES * 4)

    grid_spec = pltpu.PrefetchScalarGridSpec(
        num_scalar_prefetch=2,
        grid=(total_blocks,),
        in_specs=in_specs,
        out_specs=tuple([out_spec] * 6),
    )

    outs = pl.pallas_call(
        kernel,
        out_shape=tuple([acc_shape] * 6),
        grid_spec=grid_spec,
        compiler_params=pltpu.CompilerParams(
            dimension_semantics=("arbitrary",)),
        cost_estimate=cost,
    )(pair_ids, blk_ids,
      mains[0][0], mains[0][1],
      mains[1][0], mains[1][1],
      mains[2][0], mains[2][1])

    num = jnp.stack([outs[0].sum(), outs[2].sum(), outs[4].sum()]) + tail_num
    den = jnp.stack([outs[1].sum(), outs[3].sum(), outs[5].sum()]) + tail_den
    return num, den


@functools.partial(jax.jit, static_argnames=("weight", "smooth"))
def dice_loss_3(prediction, gt, prediction_s, gt_s, prediction_l, gt_l,
                weight=0.5, smooth=1e-8):
    # pair 0 = (prediction, gt), pair 1 = (prediction_s, gt_s),
    # pair 2 = (prediction_l, gt_l)
    num, den = _dice_sums_fused([(prediction, gt),
                                 (prediction_s, gt_s),
                                 (prediction_l, gt_l)])
    dice = 1.0 - (2.0 * num + smooth) / (den + smooth)
    # Matches DiceLoss_3.forward:
    #   weight/2 * Dice(pred_l, gt_l) + weight/2 * Dice(pred_s, gt_s)
    #   + weight * Dice(pred, gt)
    return (weight / 2.0 * dice[2]
            + weight / 2.0 * dice[1]
            + weight * dice[0])


if __name__ == "__main__":
    key = jax.random.PRNGKey(0)
    ks = jax.random.split(key, 6)

    # NCHW-shaped logits / binary targets at small shapes
    prediction = jax.random.normal(ks[0], (2, 4, 16, 16), jnp.float32)
    gt = (jax.random.uniform(ks[1], (2, 4, 16, 16)) > 0.5).astype(jnp.float32)
    prediction_s = jax.random.normal(ks[2], (2, 4, 8, 8), jnp.float32)
    gt_s = (jax.random.uniform(ks[3], (2, 4, 8, 8)) > 0.5).astype(jnp.float32)
    prediction_l = jax.random.normal(ks[4], (2, 4, 32, 32), jnp.float32)
    gt_l = (jax.random.uniform(ks[5], (2, 4, 32, 32)) > 0.5).astype(jnp.float32)

    loss = dice_loss_3(prediction, gt, prediction_s, gt_s,
                       prediction_l, gt_l)
    jax.block_until_ready(loss)

    # Pure-JAX reference (mirrors PyTorch DiceLoss_3 exactly).
    def ref_dice(p, t, smooth=1e-8):
        p = jax.nn.sigmoid(p.reshape(-1).astype(jnp.float32))
        t = t.reshape(-1).astype(jnp.float32)
        inter = 2.0 * jnp.sum(p * t) + smooth
        union = jnp.sum(p) + jnp.sum(t) + smooth
        return 1.0 - inter / union

    w = 0.5
    ref = (w / 2.0 * ref_dice(prediction_l, gt_l)
           + w / 2.0 * ref_dice(prediction_s, gt_s)
           + w * ref_dice(prediction, gt))
    assert jnp.allclose(loss, ref, rtol=1e-5, atol=1e-6), (loss, ref)

    print("KERNEL_OK")
</pallas_src>

<mosaic_0001>
module attributes {stable_mosaic.version = 11 : i64} {
  func.func @_fused_dice_kernel(%arg0: i32, %arg1: memref<3xi32, #tpu.memory_space<smem>>, %arg2: memref<3xi32, #tpu.memory_space<smem>>, %arg3: memref<16x128xf32, #tpu.memory_space<vmem>>, %arg4: memref<16x128xf32, #tpu.memory_space<vmem>>, %arg5: memref<4x128xf32, #tpu.memory_space<vmem>>, %arg6: memref<4x128xf32, #tpu.memory_space<vmem>>, %arg7: memref<64x128xf32, #tpu.memory_space<vmem>>, %arg8: memref<64x128xf32, #tpu.memory_space<vmem>>, %arg9: memref<1x128xf32, #tpu.memory_space<vmem>>, %arg10: memref<1x128xf32, #tpu.memory_space<vmem>>, %arg11: memref<1x128xf32, #tpu.memory_space<vmem>>, %arg12: memref<1x128xf32, #tpu.memory_space<vmem>>, %arg13: memref<1x128xf32, #tpu.memory_space<vmem>>, %arg14: memref<1x128xf32, #tpu.memory_space<vmem>>) attributes {dimension_semantics = [#tpu.dimension_semantics<arbitrary>], iteration_bounds = array<i64: 3>, scalar_prefetch = 2 : i64, scratch_operands = 0 : i64, tpu.core_type = #tpu.core_type<tc>, window_params = [{transform_indices = @transform_0, window_bounds = array<i64: 16, 128>}, {transform_indices = @transform_1, window_bounds = array<i64: 16, 128>}, {transform_indices = @transform_2, window_bounds = array<i64: 4, 128>}, {transform_indices = @transform_3, window_bounds = array<i64: 4, 128>}, {transform_indices = @transform_4, window_bounds = array<i64: 64, 128>}, {transform_indices = @transform_5, window_bounds = array<i64: 64, 128>}, {pipeline_mode = #tpu.pipeline_mode<synchronous>, transform_indices = @transform_6, window_bounds = array<i64: 1, 128>}, {pipeline_mode = #tpu.pipeline_mode<synchronous>, transform_indices = @transform_7, window_bounds = array<i64: 1, 128>}, {pipeline_mode = #tpu.pipeline_mode<synchronous>, transform_indices = @transform_8, window_bounds = array<i64: 1, 128>}, {pipeline_mode = #tpu.pipeline_mode<synchronous>, transform_indices = @transform_9, window_bounds = array<i64: 1, 128>}, {pipeline_mode = #tpu.pipeline_mode<synchronous>, transform_indices = @transform_10, window_bounds = array<i64: 1, 128>}, {pipeline_mode = #tpu.pipeline_mode<synchronous>, transform_indices = @transform_11, window_bounds = array<i64: 1, 128>}]} {
    %0 = arith.index_cast %arg0 : i32 to index
    %1 = memref.load %arg1[%0] : memref<3xi32, #tpu.memory_space<smem>>
    %c0_i32 = arith.constant 0 : i32
    %2 = arith.cmpi eq, %arg0, %c0_i32 : i32
    %3 = arith.extui %2 : i1 to i32
    %c0_i32_0 = arith.constant 0 : i32
    %4 = arith.cmpi ne, %3, %c0_i32_0 : i32
    scf.if %4 {
      %cst = arith.constant 0.000000e+00 : f32
      %14 = vector.broadcast %cst : f32 to vector<1x128xf32>
      %c0 = arith.constant 0 : index
      %c0_5 = arith.constant 0 : index
      %15 = vector.load %arg9[%c0, %c0_5] : memref<1x128xf32, #tpu.memory_space<vmem>>, vector<1x128xf32>
      tpu.vector_store %arg9[%c0, %c0_5], %14 {strides = array<i32>} : memref<1x128xf32, #tpu.memory_space<vmem>>, vector<1x128xf32>,
      %cst_6 = arith.constant 0.000000e+00 : f32
      %16 = vector.broadcast %cst_6 : f32 to vector<1x128xf32>
      %c0_7 = arith.constant 0 : index
      %c0_8 = arith.constant 0 : index
      %17 = vector.load %arg10[%c0_7, %c0_8] : memref<1x128xf32, #tpu.memory_space<vmem>>, vector<1x128xf32>
      tpu.vector_store %arg10[%c0_7, %c0_8], %16 {strides = array<i32>} : memref<1x128xf32, #tpu.memory_space<vmem>>, vector<1x128xf32>,
      %cst_9 = arith.constant 0.000000e+00 : f32
      %18 = vector.broadcast %cst_9 : f32 to vector<1x128xf32>
      %c0_10 = arith.constant 0 : index
      %c0_11 = arith.constant 0 : index
      %19 = vector.load %arg11[%c0_10, %c0_11] : memref<1x128xf32, #tpu.memory_space<vmem>>, vector<1x128xf32>
      tpu.vector_store %arg11[%c0_10, %c0_11], %18 {strides = array<i32>} : memref<1x128xf32, #tpu.memory_space<vmem>>, vector<1x128xf32>,
      %cst_12 = arith.constant 0.000000e+00 : f32
      %20 = vector.broadcast %cst_12 : f32 to vector<1x128xf32>
      %c0_13 = arith.constant 0 : index
      %c0_14 = arith.constant 0 : index
      %21 = vector.load %arg12[%c0_13, %c0_14] : memref<1x128xf32, #tpu.memory_space<vmem>>, vector<1x128xf32>
      tpu.vector_store %arg12[%c0_13, %c0_14], %20 {strides = array<i32>} : memref<1x128xf32, #tpu.memory_space<vmem>>, vector<1x128xf32>,
      %cst_15 = arith.constant 0.000000e+00 : f32
      %22 = vector.broadcast %cst_15 : f32 to vector<1x128xf32>
      %c0_16 = arith.constant 0 : index
      %c0_17 = arith.constant 0 : index
      %23 = vector.load %arg13[%c0_16, %c0_17] : memref<1x128xf32, #tpu.memory_space<vmem>>, vector<1x128xf32>
      tpu.vector_store %arg13[%c0_16, %c0_17], %22 {strides = array<i32>} : memref<1x128xf32, #tpu.memory_space<vmem>>, vector<1x128xf32>,
      %cst_18 = arith.constant 0.000000e+00 : f32
      %24 = vector.broadcast %cst_18 : f32 to vector<1x128xf32>
      %c0_19 = arith.constant 0 : index
      %c0_20 = arith.constant 0 : index
      %25 = vector.load %arg14[%c0_19, %c0_20] : memref<1x128xf32, #tpu.memory_space<vmem>>, vector<1x128xf32>
      tpu.vector_store %arg14[%c0_19, %c0_20], %24 {strides = array<i32>} : memref<1x128xf32, #tpu.memory_space<vmem>>, vector<1x128xf32>,
    } else {
    }
    %c0_i32_1 = arith.constant 0 : i32
    %5 = arith.cmpi eq, %1, %c0_i32_1 : i32
    %6 = arith.extui %5 : i1 to i32
    %c0_i32_2 = arith.constant 0 : i32
    %7 = arith.cmpi ne, %6, %c0_i32_2 : i32
    scf.if %7 {
      %c0 = arith.constant 0 : index
      %c0_5 = arith.constant 0 : index
      %14 = vector.load %arg3[%c0, %c0_5] : memref<16x128xf32, #tpu.memory_space<vmem>>, vector<16x128xf32>
      %c0_6 = arith.constant 0 : index
      %c0_7 = arith.constant 0 : index
      %15 = vector.load %arg4[%c0_6, %c0_7] : memref<16x128xf32, #tpu.memory_space<vmem>>, vector<16x128xf32>
      %16 = arith.negf %14 : vector<16x128xf32>
      %17 = math.exp %16 : vector<16x128xf32>
      %cst = arith.constant 1.000000e+00 : f32
      %18 = vector.broadcast %cst : f32 to vector<16x128xf32>
      %19 = arith.addf %18, %17 : vector<16x128xf32>
      %20 = arith.divf %18, %19 : vector<16x128xf32>
      %c0_8 = arith.constant 0 : index
      %c0_9 = arith.constant 0 : index
      %21 = vector.load %arg9[%c0_8, %c0_9] : memref<1x128xf32, #tpu.memory_space<vmem>>, vector<1x128xf32>
      %22 = arith.mulf %20, %15 : vector<16x128xf32>
      %cst_10 = arith.constant dense<0.000000e+00> : vector<128xf32>
      %23 = vector.multi_reduction <add>, %22, %cst_10 [0] : vector<16x128xf32> to vector<128xf32>
      %24 = vector.shape_cast %23 : vector<128xf32> to vector<1x128xf32>
      %25 = arith.addf %21, %24 : vector<1x128xf32>
      %c0_11 = arith.constant 0 : index
      %c0_12 = arith.constant 0 : index
      %26 = vector.load %arg9[%c0_11, %c0_12] : memref<1x128xf32, #tpu.memory_space<vmem>>, vector<1x128xf32>
      tpu.vector_store %arg9[%c0_11, %c0_12], %25 {strides = array<i32>} : memref<1x128xf32, #tpu.memory_space<vmem>>, vector<1x128xf32>,
      %c0_13 = arith.constant 0 : index
      %c0_14 = arith.constant 0 : index
      %27 = vector.load %arg10[%c0_13, %c0_14] : memref<1x128xf32, #tpu.memory_space<vmem>>, vector<1x128xf32>
      %28 = arith.addf %20, %15 : vector<16x128xf32>
      %cst_15 = arith.constant dense<0.000000e+00> : vector<128xf32>
      %29 = vector.multi_reduction <add>, %28, %cst_15 [0] : vector<16x128xf32> to vector<128xf32>
      %30 = vector.shape_cast %29 : vector<128xf32> to vector<1x128xf32>
      %31 = arith.addf %27, %30 : vector<1x128xf32>
      %c0_16 = arith.constant 0 : index
      %c0_17 = arith.constant 0 : index
      %32 = vector.load %arg10[%c0_16, %c0_17] : memref<1x128xf32, #tpu.memory_space<vmem>>, vector<1x128xf32>
      tpu.vector_store %arg10[%c0_16, %c0_17], %31 {strides = array<i32>} : memref<1x128xf32, #tpu.memory_space<vmem>>, vector<1x128xf32>,
    } else {
    }
    %c1_i32 = arith.constant 1 : i32
    %8 = arith.cmpi eq, %1, %c1_i32 : i32
    %9 = arith.extui %8 : i1 to i32
    %c0_i32_3 = arith.constant 0 : i32
    %10 = arith.cmpi ne, %9, %c0_i32_3 : i32
    scf.if %10 {
      %c0 = arith.constant 0 : index
      %c0_5 = arith.constant 0 : index
      %14 = vector.load %arg5[%c0, %c0_5] : memref<4x128xf32, #tpu.memory_space<vmem>>, vector<4x128xf32>
      %c0_6 = arith.constant 0 : index
      %c0_7 = arith.constant 0 : index
      %15 = vector.load %arg6[%c0_6, %c0_7] : memref<4x128xf32, #tpu.memory_space<vmem>>, vector<4x128xf32>
      %16 = arith.negf %14 : vector<4x128xf32>
      %17 = math.exp %16 : vector<4x128xf32>
      %cst = arith.constant 1.000000e+00 : f32
      %18 = vector.broadcast %cst : f32 to vector<4x128xf32>
      %19 = arith.addf %18, %17 : vector<4x128xf32>
      %20 = arith.divf %18, %19 : vector<4x128xf32>
      %c0_8 = arith.constant 0 : index
      %c0_9 = arith.constant 0 : index
      %21 = vector.load %arg11[%c0_8, %c0_9] : memref<1x128xf32, #tpu.memory_space<vmem>>, vector<1x128xf32>
      %22 = arith.mulf %20, %15 : vector<4x128xf32>
      %cst_10 = arith.constant dense<0.000000e+00> : vector<128xf32>
      %23 = vector.multi_reduction <add>, %22, %cst_10 [0] : vector<4x128xf32> to vector<128xf32>
      %24 = vector.shape_cast %23 : vector<128xf32> to vector<1x128xf32>
      %25 = arith.addf %21, %24 : vector<1x128xf32>
      %c0_11 = arith.constant 0 : index
      %c0_12 = arith.constant 0 : index
      %26 = vector.load %arg11[%c0_11, %c0_12] : memref<1x128xf32, #tpu.memory_space<vmem>>, vector<1x128xf32>
      tpu.vector_store %arg11[%c0_11, %c0_12], %25 {strides = array<i32>} : memref<1x128xf32, #tpu.memory_space<vmem>>, vector<1x128xf32>,
      %c0_13 = arith.constant 0 : index
      %c0_14 = arith.constant 0 : index
      %27 = vector.load %arg12[%c0_13, %c0_14] : memref<1x128xf32, #tpu.memory_space<vmem>>, vector<1x128xf32>
      %28 = arith.addf %20, %15 : vector<4x128xf32>
      %cst_15 = arith.constant dense<0.000000e+00> : vector<128xf32>
      %29 = vector.multi_reduction <add>, %28, %cst_15 [0] : vector<4x128xf32> to vector<128xf32>
      %30 = vector.shape_cast %29 : vector<128xf32> to vector<1x128xf32>
      %31 = arith.addf %27, %30 : vector<1x128xf32>
      %c0_16 = arith.constant 0 : index
      %c0_17 = arith.constant 0 : index
      %32 = vector.load %arg12[%c0_16, %c0_17] : memref<1x128xf32, #tpu.memory_space<vmem>>, vector<1x128xf32>
      tpu.vector_store %arg12[%c0_16, %c0_17], %31 {strides = array<i32>} : memref<1x128xf32, #tpu.memory_space<vmem>>, vector<1x128xf32>,
    } else {
    }
    %c2_i32 = arith.constant 2 : i32
    %11 = arith.cmpi eq, %1, %c2_i32 : i32
    %12 = arith.extui %11 : i1 to i32
    %c0_i32_4 = arith.constant 0 : i32
    %13 = arith.cmpi ne, %12, %c0_i32_4 : i32
    scf.if %13 {
      %c0 = arith.constant 0 : index
      %c0_5 = arith.constant 0 : index
      %14 = vector.load %arg7[%c0, %c0_5] : memref<64x128xf32, #tpu.memory_space<vmem>>, vector<64x128xf32>
      %c0_6 = arith.constant 0 : index
      %c0_7 = arith.constant 0 : index
      %15 = vector.load %arg8[%c0_6, %c0_7] : memref<64x128xf32, #tpu.memory_space<vmem>>, vector<64x128xf32>
      %16 = arith.negf %14 : vector<64x128xf32>
      %17 = math.exp %16 : vector<64x128xf32>
      %cst = arith.constant 1.000000e+00 : f32
      %18 = vector.broadcast %cst : f32 to vector<64x128xf32>
      %19 = arith.addf %18, %17 : vector<64x128xf32>
      %20 = arith.divf %18, %19 : vector<64x128xf32>
      %c0_8 = arith.constant 0 : index
      %c0_9 = arith.constant 0 : index
      %21 = vector.load %arg13[%c0_8, %c0_9] : memref<1x128xf32, #tpu.memory_space<vmem>>, vector<1x128xf32>
      %22 = arith.mulf %20, %15 : vector<64x128xf32>
      %cst_10 = arith.constant dense<0.000000e+00> : vector<128xf32>
      %23 = vector.multi_reduction <add>, %22, %cst_10 [0] : vector<64x128xf32> to vector<128xf32>
      %24 = vector.shape_cast %23 : vector<128xf32> to vector<1x128xf32>
      %25 = arith.addf %21, %24 : vector<1x128xf32>
      %c0_11 = arith.constant 0 : index
      %c0_12 = arith.constant 0 : index
      %26 = vector.load %arg13[%c0_11, %c0_12] : memref<1x128xf32, #tpu.memory_space<vmem>>, vector<1x128xf32>
      tpu.vector_store %arg13[%c0_11, %c0_12], %25 {strides = array<i32>} : memref<1x128xf32, #tpu.memory_space<vmem>>, vector<1x128xf32>,
      %c0_13 = arith.constant 0 : index
      %c0_14 = arith.constant 0 : index
      %27 = vector.load %arg14[%c0_13, %c0_14] : memref<1x128xf32, #tpu.memory_space<vmem>>, vector<1x128xf32>
      %28 = arith.addf %20, %15 : vector<64x128xf32>
      %cst_15 = arith.constant dense<0.000000e+00> : vector<128xf32>
      %29 = vector.multi_reduction <add>, %28, %cst_15 [0] : vector<64x128xf32> to vector<128xf32>
      %30 = vector.shape_cast %29 : vector<128xf32> to vector<1x128xf32>
      %31 = arith.addf %27, %30 : vector<1x128xf32>
      %c0_16 = arith.constant 0 : index
      %c0_17 = arith.constant 0 : index
      %32 = vector.load %arg14[%c0_16, %c0_17] : memref<1x128xf32, #tpu.memory_space<vmem>>, vector<1x128xf32>
      tpu.vector_store %arg14[%c0_16, %c0_17], %31 {strides = array<i32>} : memref<1x128xf32, #tpu.memory_space<vmem>>, vector<1x128xf32>,
    } else {
    }
    return
  }
  func.func @transform_0(%arg0: i32, %arg1: memref<3xi32, #tpu.memory_space<smem>>, %arg2: memref<3xi32, #tpu.memory_space<smem>>) -> (i32, i32) {
    %0 = arith.index_cast %arg0 : i32 to index
    %1 = memref.load %arg1[%0] : memref<3xi32, #tpu.memory_space<smem>>
    %c0_i32 = arith.constant 0 : i32
    %2 = arith.cmpi eq, %1, %c0_i32 : i32
    %3 = arith.index_cast %arg0 : i32 to index
    %4 = memref.load %arg2[%3] : memref<3xi32, #tpu.memory_space<smem>>
    %c0_i32_0 = arith.constant 0 : i32
    %5 = arith.select %2, %4, %c0_i32_0 : i32
    %c0_i32_1 = arith.constant 0 : i32
    %c0_i32_2 = arith.constant 0 : i32
    return %5, %c0_i32_1 : i32, i32
  }
  func.func @transform_1(%arg0: i32, %arg1: memref<3xi32, #tpu.memory_space<smem>>, %arg2: memref<3xi32, #tpu.memory_space<smem>>) -> (i32, i32) {
    %0 = arith.index_cast %arg0 : i32 to index
    %1 = memref.load %arg1[%0] : memref<3xi32, #tpu.memory_space<smem>>
    %c0_i32 = arith.constant 0 : i32
    %2 = arith.cmpi eq, %1, %c0_i32 : i32
    %3 = arith.index_cast %arg0 : i32 to index
    %4 = memref.load %arg2[%3] : memref<3xi32, #tpu.memory_space<smem>>
    %c0_i32_0 = arith.constant 0 : i32
    %5 = arith.select %2, %4, %c0_i32_0 : i32
    %c0_i32_1 = arith.constant 0 : i32
    %c0_i32_2 = arith.constant 0 : i32
    return %5, %c0_i32_1 : i32, i32
  }
  func.func @transform_2(%arg0: i32, %arg1: memref<3xi32, #tpu.memory_space<smem>>, %arg2: memref<3xi32, #tpu.memory_space<smem>>) -> (i32, i32) {
    %0 = arith.index_cast %arg0 : i32 to index
    %1 = memref.load %arg1[%0] : memref<3xi32, #tpu.memory_space<smem>>
    %c1_i32 = arith.constant 1 : i32
    %2 = arith.cmpi eq, %1, %c1_i32 : i32
    %3 = arith.index_cast %arg0 : i32 to index
    %4 = memref.load %arg2[%3] : memref<3xi32, #tpu.memory_space<smem>>
    %c0_i32 = arith.constant 0 : i32
    %5 = arith.select %2, %4, %c0_i32 : i32
    %c0_i32_0 = arith.constant 0 : i32
    %c0_i32_1 = arith.constant 0 : i32
    return %5, %c0_i32_0 : i32, i32
  }
  func.func @transform_3(%arg0: i32, %arg1: memref<3xi32, #tpu.memory_space<smem>>, %arg2: memref<3xi32, #tpu.memory_space<smem>>) -> (i32, i32) {
    %0 = arith.index_cast %arg0 : i32 to index
    %1 = memref.load %arg1[%0] : memref<3xi32, #tpu.memory_space<smem>>
    %c1_i32 = arith.constant 1 : i32
    %2 = arith.cmpi eq, %1, %c1_i32 : i32
    %3 = arith.index_cast %arg0 : i32 to index
    %4 = memref.load %arg2[%3] : memref<3xi32, #tpu.memory_space<smem>>
    %c0_i32 = arith.constant 0 : i32
    %5 = arith.select %2, %4, %c0_i32 : i32
    %c0_i32_0 = arith.constant 0 : i32
    %c0_i32_1 = arith.constant 0 : i32
    return %5, %c0_i32_0 : i32, i32
  }
  func.func @transform_4(%arg0: i32, %arg1: memref<3xi32, #tpu.memory_space<smem>>, %arg2: memref<3xi32, #tpu.memory_space<smem>>) -> (i32, i32) {
    %0 = arith.index_cast %arg0 : i32 to index
    %1 = memref.load %arg1[%0] : memref<3xi32, #tpu.memory_space<smem>>
    %c2_i32 = arith.constant 2 : i32
    %2 = arith.cmpi eq, %1, %c2_i32 : i32
    %3 = arith.index_cast %arg0 : i32 to index
    %4 = memref.load %arg2[%3] : memref<3xi32, #tpu.memory_space<smem>>
    %c0_i32 = arith.constant 0 : i32
    %5 = arith.select %2, %4, %c0_i32 : i32
    %c0_i32_0 = arith.constant 0 : i32
    %c0_i32_1 = arith.constant 0 : i32
    return %5, %c0_i32_0 : i32, i32
  }
  func.func @transform_5(%arg0: i32, %arg1: memref<3xi32, #tpu.memory_space<smem>>, %arg2: memref<3xi32, #tpu.memory_space<smem>>) -> (i32, i32) {
    %0 = arith.index_cast %arg0 : i32 to index
    %1 = memref.load %arg1[%0] : memref<3xi32, #tpu.memory_space<smem>>
    %c2_i32 = arith.constant 2 : i32
    %2 = arith.cmpi eq, %1, %c2_i32 : i32
    %3 = arith.index_cast %arg0 : i32 to index
    %4 = memref.load %arg2[%3] : memref<3xi32, #tpu.memory_space<smem>>
    %c0_i32 = arith.constant 0 : i32
    %5 = arith.select %2, %4, %c0_i32 : i32
    %c0_i32_0 = arith.constant 0 : i32
    %c0_i32_1 = arith.constant 0 : i32
    return %5, %c0_i32_0 : i32, i32
  }
  func.func @transform_6(%arg0: i32, %arg1: memref<3xi32, #tpu.memory_space<smem>>, %arg2: memref<3xi32, #tpu.memory_space<smem>>) -> (i32, i32) {
    %c0_i32 = arith.constant 0 : i32
    %c0_i32_0 = arith.constant 0 : i32
    %c0_i32_1 = arith.constant 0 : i32
    return %c0_i32, %c0_i32_0 : i32, i32
  }
  func.func @transform_7(%arg0: i32, %arg1: memref<3xi32, #tpu.memory_space<smem>>, %arg2: memref<3xi32, #tpu.memory_space<smem>>) -> (i32, i32) {
    %c0_i32 = arith.constant 0 : i32
    %c0_i32_0 = arith.constant 0 : i32
    %c0_i32_1 = arith.constant 0 : i32
    return %c0_i32, %c0_i32_0 : i32, i32
  }
  func.func @transform_8(%arg0: i32, %arg1: memref<3xi32, #tpu.memory_space<smem>>, %arg2: memref<3xi32, #tpu.memory_space<smem>>) -> (i32, i32) {
    %c0_i32 = arith.constant 0 : i32
    %c0_i32_0 = arith.constant 0 : i32
    %c0_i32_1 = arith.constant 0 : i32
    return %c0_i32, %c0_i32_0 : i32, i32
  }
  func.func @transform_9(%arg0: i32, %arg1: memref<3xi32, #tpu.memory_space<smem>>, %arg2: memref<3xi32, #tpu.memory_space<smem>>) -> (i32, i32) {
    %c0_i32 = arith.constant 0 : i32
    %c0_i32_0 = arith.constant 0 : i32
    %c0_i32_1 = arith.constant 0 : i32
    return %c0_i32, %c0_i32_0 : i32, i32
  }
  func.func @transform_10(%arg0: i32, %arg1: memref<3xi32, #tpu.memory_space<smem>>, %arg2: memref<3xi32, #tpu.memory_space<smem>>) -> (i32, i32) {
    %c0_i32 = arith.constant 0 : i32
    %c0_i32_0 = arith.constant 0 : i32
    %c0_i32_1 = arith.constant 0 : i32
    return %c0_i32, %c0_i32_0 : i32, i32
  }
  func.func @transform_11(%arg0: i32, %arg1: memref<3xi32, #tpu.memory_space<smem>>, %arg2: memref<3xi32, #tpu.memory_space<smem>>) -> (i32, i32) {
    %c0_i32 = arith.constant 0 : i32
    %c0_i32_0 = arith.constant 0 : i32
    %c0_i32_1 = arith.constant 0 : i32
    return %c0_i32, %c0_i32_0 : i32, i32
  }
}

</mosaic_0001>

<llo_original>
// kernel: dice_loss_3.1
$region0: #{dice_loss_3.1}
  #allocation0 [shape = 'u32[]', space=smem, size = 0x4, offset = 0x4, fixed_abs, tag = 'smem constant byte address 0x4 - core index']
  #allocation1 [shape = 'u32[144,128]{1,0:T(1,128)}', space=vmem, size = 0x12000, scoped, tag = 'internal scratch']
  #allocation2 [shape = 's32[1]{0}', space=sflag, size = 0x4, scoped, tag = 'scoped memory for dice_loss_3.1']
  #allocation3 [shape = 'u8[512]{0}', space=smem, size = 0x200, scoped, tag = 'prefetched SMEM operand 0']
  #allocation4 [shape = 'u8[512]{0}', space=smem, size = 0x200, scoped, tag = 'prefetched SMEM operand 1']
  %s0 = inlined_call_operand.vmem [shape: s32[3], index: 0, kind: input, shape index: {}]
  %s1 = inlined_call_operand.vmem [shape: s32[3], index: 1, kind: input, shape index: {}]
  %s2 = inlined_call_operand.vmem [shape: f32[16,128], index: 2, kind: input, shape index: {}]
  %s3 = inlined_call_operand.vmem [shape: f32[16,128], index: 3, kind: input, shape index: {}]
  %s4 = inlined_call_operand.vmem [shape: f32[4,128], index: 4, kind: input, shape index: {}]
  %s5 = inlined_call_operand.vmem [shape: f32[4,128], index: 5, kind: input, shape index: {}]
  %s6 = inlined_call_operand.vmem [shape: f32[64,128], index: 6, kind: input, shape index: {}]
  %s7 = inlined_call_operand.vmem [shape: f32[64,128], index: 7, kind: input, shape index: {}]
  %s8 = inlined_call_operand.vmem [shape: f32[1,128], index: 8, kind: output, shape index: {0}]
  %s9 = inlined_call_operand.vmem [shape: f32[1,128], index: 9, kind: output, shape index: {1}]
  %s10 = inlined_call_operand.vmem [shape: f32[1,128], index: 10, kind: output, shape index: {2}]
  %s11 = inlined_call_operand.vmem [shape: f32[1,128], index: 11, kind: output, shape index: {3}]
  %s12 = inlined_call_operand.vmem [shape: f32[1,128], index: 12, kind: output, shape index: {4}]
  %s13 = inlined_call_operand.vmem [shape: f32[1,128], index: 13, kind: output, shape index: {5}]
  %14 = xla_tuple %s8, %s9, %s10, %s11, %s12, %s13
  %s15 = sld [smem:[#allocation0]]
  $region113: #{dice_loss_3.1} parent=0
    _
  %s17 = ssub.s32 1, %s15
  %s18 = scalar_select 0, %s17, %s15
  %s19 = sshll.u32 %s0, 4
  %s20 = int_to_ptr.vmem [resolvable:$true] %s19
  %22 = dma.vmem_to_smem %s20, 16, [#allocation3], [#allocation2]
  %s23 = sshll.u32 %s1, 4
  %s24 = int_to_ptr.vmem [resolvable:$true] %s23
  %26 = dma.vmem_to_smem %s24, 16, [#allocation4], [#allocation2]
  %27 = dma.done [#allocation2], 32
  %28 = sfence
  loop: start=0, step=1, limit=5
  $region2: #{dice_loss_3.1} parent=0 // loop_pre_header
    _
  $region3: #{dice_loss_3.1} parent=0 // loop_header
    %s30 = sphi 0, %s34
    %p31 = scmp.ge.s32.totalorder %s30, 5
    %s48 = sphi 0, %s50
    %s51 = sphi 0, %s48
    %s52 = sphi 0, %s51
    %s68 = sphi 0, %s52
    %s82 = sphi 0, %s84
    %s85 = sphi 0, %s82
    %s86 = sphi 0, %s85
    %s102 = sphi 0, %s86
    %s116 = sphi 0, %s118
    %s119 = sphi 0, %s116
    %s120 = sphi 0, %s119
    %s136 = sphi 0, %s120
    %s150 = sphi 0, %s152
    %s153 = sphi 0, %s150
    %s154 = sphi 0, %s153
    %s170 = sphi 0, %s154
    %s184 = sphi 0, %s186
    %s187 = sphi 0, %s184
    %s188 = sphi 0, %s187
    %s204 = sphi 0, %s188
    %s218 = sphi 0, %s220
    %s221 = sphi 0, %s218
    %s222 = sphi 0, %s221
    %s238 = sphi 0, %s222
    %s242 = sphi 0, %s242
    %s244 = sphi 0, %s242
    %s245 = sphi 0, %s244
    %s259 = sphi 0, %s245
    %s263 = sphi 0, %s263
    %s265 = sphi 0, %s263
    %s266 = sphi 0, %s265
    %s280 = sphi 0, %s266
    %s284 = sphi 0, %s284
    %s286 = sphi 0, %s284
    %s287 = sphi 0, %s286
    %s301 = sphi 0, %s287
    %s305 = sphi 0, %s305
    %s307 = sphi 0, %s305
    %s308 = sphi 0, %s307
    %s322 = sphi 0, %s308
    %s326 = sphi 0, %s326
    %s328 = sphi 0, %s326
    %s329 = sphi 0, %s328
    %s343 = sphi 0, %s329
    %s347 = sphi 0, %s347
    %s349 = sphi 0, %s347
    %s350 = sphi 0, %s349
    %s364 = sphi 0, %s350
  $region4: #{dice_loss_3.1} parent=0 // loop_header_branch
    %33 = sbr.rel (%p31) target = $region8
  $region5: #{dice_loss_3.1} parent=0 // loop_body
    %s35 = ssub.s32 %s30, 1
    %s36 = ssub.s32 %s30, 2
    %s37 = sadd.s32 %s30, 1
    %s38 = sld [smem:[#allocation3 + %s30]]
    %p39 = scmp.eq.s32.totalorder %s38, 0
    %s40 = sld [smem:[#allocation4 + %s30]]
    %s41 = scalar_select %p39, %s40, 0
    %s42 = sld [smem:[#allocation3 + %s37]]
    %p43 = scmp.eq.s32.totalorder %s42, 0
    %s44 = sld [smem:[#allocation4 + %s37]]
    %s45 = scalar_select %p43, %s44, 0
    %s46 = ssub.s32 %s41, %s45
    %p47 = scmp.eq.s32.totalorder %s46, 0
    %s49 = sadd.s32 %s48, 1
    %s50 = scalar_select %p47, %s48, %s49
    %p53 = pneg %p47
    %p54 = scmp.eq.s32.totalorder %s30, 2
    %p55 = por %p53, %p54
    %p56 = scmp.ne.s32.totalorder %s48, %s51
    %p57 = scmp.eq.s32.totalorder %s30, 0
    %p58 = por %p56, %p57
    %p59 = scmp.ne.s32.totalorder %s48, %s51
    %p60 = scmp.eq.s32.totalorder %s35, 2
    %p61 = por %p59, %p60
    %p62 = scmp.ne.s32.totalorder %s51, %s52
    %p63 = scmp.eq.s32.totalorder %s35, 0
    %p64 = por %p62, %p63
    %p65 = scmp.ne.s32.totalorder %s51, %s52
    %p66 = scmp.eq.s32.totalorder %s36, 2
    %p67 = por %p65, %p66
    %p69 = scmp.ne.s32.totalorder %s52, %s68
    %p70 = scmp.eq.s32.totalorder %s36, 0
    %p71 = por %p69, %p70
    %s72 = sld [smem:[#allocation3 + %s30]]
    %p73 = scmp.eq.s32.totalorder %s72, 0
    %s74 = sld [smem:[#allocation4 + %s30]]
    %s75 = scalar_select %p73, %s74, 0
    %s76 = sld [smem:[#allocation3 + %s37]]
    %p77 = scmp.eq.s32.totalorder %s76, 0
    %s78 = sld [smem:[#allocation4 + %s37]]
    %s79 = scalar_select %p77, %s78, 0
    %s80 = ssub.s32 %s75, %s79
    %p81 = scmp.eq.s32.totalorder %s80, 0
    %s83 = sadd.s32 %s82, 1
    %s84 = scalar_select %p81, %s82, %s83
    %p87 = pneg %p81
    %p88 = scmp.eq.s32.totalorder %s30, 2
    %p89 = por %p87, %p88
    %p90 = scmp.ne.s32.totalorder %s82, %s85
    %p91 = scmp.eq.s32.totalorder %s30, 0
    %p92 = por %p90, %p91
    %p93 = scmp.ne.s32.totalorder %s82, %s85
    %p94 = scmp.eq.s32.totalorder %s35, 2
    %p95 = por %p93, %p94
    %p96 = scmp.ne.s32.totalorder %s85, %s86
    %p97 = scmp.eq.s32.totalorder %s35, 0
    %p98 = por %p96, %p97
    %p99 = scmp.ne.s32.totalorder %s85, %s86
    %p100 = scmp.eq.s32.totalorder %s36, 2
    %p101 = por %p99, %p100
    %p103 = scmp.ne.s32.totalorder %s86, %s102
    %p104 = scmp.eq.s32.totalorder %s36, 0
    %p105 = por %p103, %p104
    %s106 = sld [smem:[#allocation3 + %s30]]
    %p107 = scmp.eq.s32.totalorder %s106, 1
    %s108 = sld [smem:[#allocation4 + %s30]]
    %s109 = scalar_select %p107, %s108, 0
    %s110 = sld [smem:[#allocation3 + %s37]]
    %p111 = scmp.eq.s32.totalorder %s110, 1
    %s112 = sld [smem:[#allocation4 + %s37]]
    %s113 = scalar_select %p111, %s112, 0
    %s114 = ssub.s32 %s109, %s113
    %p115 = scmp.eq.s32.totalorder %s114, 0
    %s117 = sadd.s32 %s116, 1
    %s118 = scalar_select %p115, %s116, %s117
    %p121 = pneg %p115
    %p122 = scmp.eq.s32.totalorder %s30, 2
    %p123 = por %p121, %p122
    %p124 = scmp.ne.s32.totalorder %s116, %s119
    %p125 = scmp.eq.s32.totalorder %s30, 0
    %p126 = por %p124, %p125
    %p127 = scmp.ne.s32.totalorder %s116, %s119
    %p128 = scmp.eq.s32.totalorder %s35, 2
    %p129 = por %p127, %p128
    %p130 = scmp.ne.s32.totalorder %s119, %s120
    %p131 = scmp.eq.s32.totalorder %s35, 0
    %p132 = por %p130, %p131
    %p133 = scmp.ne.s32.totalorder %s119, %s120
    %p134 = scmp.eq.s32.totalorder %s36, 2
    %p135 = por %p133, %p134
    %p137 = scmp.ne.s32.totalorder %s120, %s136
    %p138 = scmp.eq.s32.totalorder %s36, 0
    %p139 = por %p137, %p138
    %s140 = sld [smem:[#allocation3 + %s30]]
    %p141 = scmp.eq.s32.totalorder %s140, 1
    %s142 = sld [smem:[#allocation4 + %s30]]
    %s143 = scalar_select %p141, %s142, 0
    %s144 = sld [smem:[#allocation3 + %s37]]
    %p145 = scmp.eq.s32.totalorder %s144, 1
    %s146 = sld [smem:[#allocation4 + %s37]]
    %s147 = scalar_select %p145, %s146, 0
    %s148 = ssub.s32 %s143, %s147
    %p149 = scmp.eq.s32.totalorder %s148, 0
    %s151 = sadd.s32 %s150, 1
    %s152 = scalar_select %p149, %s150, %s151
    %p155 = pneg %p149
    %p156 = scmp.eq.s32.totalorder %s30, 2
    %p157 = por %p155, %p156
    %p158 = scmp.ne.s32.totalorder %s150, %s153
    %p159 = scmp.eq.s32.totalorder %s30, 0
    %p160 = por %p158, %p159
    %p161 = scmp.ne.s32.totalorder %s150, %s153
    %p162 = scmp.eq.s32.totalorder %s35, 2
    %p163 = por %p161, %p162
    %p164 = scmp.ne.s32.totalorder %s153, %s154
    %p165 = scmp.eq.s32.totalorder %s35, 0
    %p166 = por %p164, %p165
    %p167 = scmp.ne.s32.totalorder %s153, %s154
    %p168 = scmp.eq.s32.totalorder %s36, 2
    %p169 = por %p167, %p168
    %p171 = scmp.ne.s32.totalorder %s154, %s170
    %p172 = scmp.eq.s32.totalorder %s36, 0
    %p173 = por %p171, %p172
    %s174 = sld [smem:[#allocation3 + %s30]]
    %p175 = scmp.eq.s32.totalorder %s174, 2
    %s176 = sld [smem:[#allocation4 + %s30]]
    %s177 = scalar_select %p175, %s176, 0
    %s178 = sld [smem:[#allocation3 + %s37]]
    %p179 = scmp.eq.s32.totalorder %s178, 2
    %s180 = sld [smem:[#allocation4 + %s37]]
    %s181 = scalar_select %p179, %s180, 0
    %s182 = ssub.s32 %s177, %s181
    %p183 = scmp.eq.s32.totalorder %s182, 0
    %s185 = sadd.s32 %s184, 1
    %s186 = scalar_select %p183, %s184, %s185
    %p189 = pneg %p183
    %p190 = scmp.eq.s32.totalorder %s30, 2
    %p191 = por %p189, %p190
    %p192 = scmp.ne.s32.totalorder %s184, %s187
    %p193 = scmp.eq.s32.totalorder %s30, 0
    %p194 = por %p192, %p193
    %p195 = scmp.ne.s32.totalorder %s184, %s187
    %p196 = scmp.eq.s32.totalorder %s35, 2
    %p197 = por %p195, %p196
    %p198 = scmp.ne.s32.totalorder %s187, %s188
    %p199 = scmp.eq.s32.totalorder %s35, 0
    %p200 = por %p198, %p199
    %p201 = scmp.ne.s32.totalorder %s187, %s188
    %p202 = scmp.eq.s32.totalorder %s36, 2
    %p203 = por %p201, %p202
    %p205 = scmp.ne.s32.totalorder %s188, %s204
    %p206 = scmp.eq.s32.totalorder %s36, 0
    %p207 = por %p205, %p206
    %s208 = sld [smem:[#allocation3 + %s30]]
    %p209 = scmp.eq.s32.totalorder %s208, 2
    %s210 = sld [smem:[#allocation4 + %s30]]
    %s211 = scalar_select %p209, %s210, 0
    %s212 = sld [smem:[#allocation3 + %s37]]
    %p213 = scmp.eq.s32.totalorder %s212, 2
    %s214 = sld [smem:[#allocation4 + %s37]]
    %s215 = scalar_select %p213, %s214, 0
    %s216 = ssub.s32 %s211, %s215
    %p217 = scmp.eq.s32.totalorder %s216, 0
    %s219 = sadd.s32 %s218, 1
    %s220 = scalar_select %p217, %s218, %s219
    %p223 = pneg %p217
    %p224 = scmp.eq.s32.totalorder %s30, 2
    %p225 = por %p223, %p224
    %p226 = scmp.ne.s32.totalorder %s218, %s221
    %p227 = scmp.eq.s32.totalorder %s30, 0
    %p228 = por %p226, %p227
    %p229 = scmp.ne.s32.totalorder %s218, %s221
    %p230 = scmp.eq.s32.totalorder %s35, 2
    %p231 = por %p229, %p230
    %p232 = scmp.ne.s32.totalorder %s221, %s222
    %p233 = scmp.eq.s32.totalorder %s35, 0
    %p234 = por %p232, %p233
    %p235 = scmp.ne.s32.totalorder %s221, %s222
    %p236 = scmp.eq.s32.totalorder %s36, 2
    %p237 = por %p235, %p236
    %p239 = scmp.ne.s32.totalorder %s222, %s238
    %p240 = scmp.eq.s32.totalorder %s36, 0
    %p241 = por %p239, %p240
    %s243 = sadd.s32 %s242, 1
    %p246 = scmp.eq.s32.totalorder %s30, 2
    %p247 = scmp.ne.s32.totalorder %s242, %s244
    %p248 = scmp.eq.s32.totalorder %s30, 0
    %p249 = por %p247, %p248
    %p250 = scmp.ne.s32.totalorder %s242, %s244
    %p251 = scmp.eq.s32.totalorder %s35, 2
    %p252 = por %p250, %p251
    %p253 = scmp.ne.s32.totalorder %s244, %s245
    %p254 = scmp.eq.s32.totalorder %s35, 0
    %p255 = por %p253, %p254
    %p256 = scmp.ne.s32.totalorder %s244, %s245
    %p257 = scmp.eq.s32.totalorder %s36, 2
    %p258 = por %p256, %p257
    %p260 = scmp.ne.s32.totalorder %s245, %s259
    %p261 = scmp.eq.s32.totalorder %s36, 0
    %p262 = por %p260, %p261
    %s264 = sadd.s32 %s263, 1
    %p267 = scmp.eq.s32.totalorder %s30, 2
    %p268 = scmp.ne.s32.totalorder %s263, %s265
    %p269 = scmp.eq.s32.totalorder %s30, 0
    %p270 = por %p268, %p269
    %p271 = scmp.ne.s32.totalorder %s263, %s265
    %p272 = scmp.eq.s32.totalorder %s35, 2
    %p273 = por %p271, %p272
    %p274 = scmp.ne.s32.totalorder %s265, %s266
    %p275 = scmp.eq.s32.totalorder %s35, 0
    %p276 = por %p274, %p275
    %p277 = scmp.ne.s32.totalorder %s265, %s266
    %p278 = scmp.eq.s32.totalorder %s36, 2
    %p279 = por %p277, %p278
    %p281 = scmp.ne.s32.totalorder %s266, %s280
    %p282 = scmp.eq.s32.totalorder %s36, 0
    %p283 = por %p281, %p282
    %s285 = sadd.s32 %s284, 1
    %p288 = scmp.eq.s32.totalorder %s30, 2
    %p289 = scmp.ne.s32.totalorder %s284, %s286
    %p290 = scmp.eq.s32.totalorder %s30, 0
    %p291 = por %p289, %p290
    %p292 = scmp.ne.s32.totalorder %s284, %s286
    %p293 = scmp.eq.s32.totalorder %s35, 2
    %p294 = por %p292, %p293
    %p295 = scmp.ne.s32.totalorder %s286, %s287
    %p296 = scmp.eq.s32.totalorder %s35, 0
    %p297 = por %p295, %p296
    %p298 = scmp.ne.s32.totalorder %s286, %s287
    %p299 = scmp.eq.s32.totalorder %s36, 2
    %p300 = por %p298, %p299
    %p302 = scmp.ne.s32.totalorder %s287, %s301
    %p303 = scmp.eq.s32.totalorder %s36, 0
    %p304 = por %p302, %p303
    %s306 = sadd.s32 %s305, 1
    %p309 = scmp.eq.s32.totalorder %s30, 2
    %p310 = scmp.ne.s32.totalorder %s305, %s307
    %p311 = scmp.eq.s32.totalorder %s30, 0
    %p312 = por %p310, %p311
    %p313 = scmp.ne.s32.totalorder %s305, %s307
    %p314 = scmp.eq.s32.totalorder %s35, 2
    %p315 = por %p313, %p314
    %p316 = scmp.ne.s32.totalorder %s307, %s308
    %p317 = scmp.eq.s32.totalorder %s35, 0
    %p318 = por %p316, %p317
    %p319 = scmp.ne.s32.totalorder %s307, %s308
    %p320 = scmp.eq.s32.totalorder %s36, 2
    %p321 = por %p319, %p320
    %p323 = scmp.ne.s32.totalorder %s308, %s322
    %p324 = scmp.eq.s32.totalorder %s36, 0
    %p325 = por %p323, %p324
    %s327 = sadd.s32 %s326, 1
    %p330 = scmp.eq.s32.totalorder %s30, 2
    %p331 = scmp.ne.s32.totalorder %s326, %s328
    %p332 = scmp.eq.s32.totalorder %s30, 0
    %p333 = por %p331, %p332
    %p334 = scmp.ne.s32.totalorder %s326, %s328
    %p335 = scmp.eq.s32.totalorder %s35, 2
    %p336 = por %p334, %p335
    %p337 = scmp.ne.s32.totalorder %s328, %s329
    %p338 = scmp.eq.s32.totalorder %s35, 0
    %p339 = por %p337, %p338
    %p340 = scmp.ne.s32.totalorder %s328, %s329
    %p341 = scmp.eq.s32.totalorder %s36, 2
    %p342 = por %p340, %p341
    %p344 = scmp.ne.s32.totalorder %s329, %s343
    %p345 = scmp.eq.s32.totalorder %s36, 0
    %p346 = por %p344, %p345
    %s348 = sadd.s32 %s347, 1
    %p351 = scmp.eq.s32.totalorder %s30, 2
    %p352 = scmp.ne.s32.totalorder %s347, %s349
    %p353 = scmp.eq.s32.totalorder %s30, 0
    %p354 = por %p352, %p353
    %p355 = scmp.ne.s32.totalorder %s347, %s349
    %p356 = scmp.eq.s32.totalorder %s35, 2
    %p357 = por %p355, %p356
    %p358 = scmp.ne.s32.totalorder %s349, %s350
    %p359 = scmp.eq.s32.totalorder %s35, 0
    %p360 = por %p358, %p359
    %p361 = scmp.ne.s32.totalorder %s349, %s350
    %p362 = scmp.eq.s32.totalorder %s36, 2
    %p363 = por %p361, %p362
    %p365 = scmp.ne.s32.totalorder %s350, %s364
    %p366 = scmp.eq.s32.totalorder %s36, 0
    %p367 = por %p365, %p366
    %p368 = scmp.le.s32.totalorder 1, %s30
    %p369 = scmp.lt.s32.totalorder %s30, 4
    %p370 = pnand %p368, %p369
    %p371 = pneg %p370
    // Predicated region
    $region9: #{dice_loss_3.1} parent=5 // pred_check
      _
    $region10: #{dice_loss_3.1} parent=5 // pred_check_branch
      %373 = sbr.rel (%p370) target = $region12
    $region11: #{dice_loss_3.1} parent=5 // pred_region
      %s374 = ssub.s32 %s30, 1
    $region12: #{dice_loss_3.1} parent=5 // pred_fallthru
      _
    %p375 = scmp.lt.s32.totalorder %s30, 3
    // Predicated region
    $region13: #{dice_loss_3.1} parent=5 // pred_check
      %p376 = pneg %p375
    $region14: #{dice_loss_3.1} parent=5 // pred_check_branch
      %378 = sbr.rel (%p376) target = $region16
    $region15: #{dice_loss_3.1} parent=5 // pred_region
      // Predicated region
      $region17: #{dice_loss_3.1} parent=15 // pred_check
        %p379 = pneg %p58
      $region18: #{dice_loss_3.1} parent=15 // pred_check_branch
        %381 = sbr.rel (%p379) target = $region20
      $region19: #{dice_loss_3.1} parent=15 // pred_region
        %s382 = sld [smem:[#allocation3 + %s30]]
        %p383 = scmp.eq.s32.totalorder %s382, 0
        %s384 = sld [smem:[#allocation4 + %s30]]
        %s385 = scalar_select %p383, %s384, 0
        %s386 = smul.u32 2, %s385
        %p387 = scmp.lt.s32.totalorder %s386, 1
        %s388 = scalar_select %p387, %s386, 1
        %s389 = smul.addr %s388, 8
        %s390 = scalar_lea.vmem %s2, %s389
        %s391 = sld [smem:[#allocation3 + %s30]]
        %p392 = scmp.eq.s32.totalorder %s391, 0
        %s393 = sld [smem:[#allocation4 + %s30]]
        %s394 = scalar_select %p392, %s393, 0
        %s395 = smul.u32 2, %s394
      $region20: #{dice_loss_3.1} parent=15 // pred_fallthru
        _
      // Predicated region
      $region21: #{dice_loss_3.1} parent=15 // pred_check
        %p396 = pneg %p92
      $region22: #{dice_loss_3.1} parent=15 // pred_check_branch
        %398 = sbr.rel (%p396) target = $region24
      $region23: #{dice_loss_3.1} parent=15 // pred_region
        %s399 = sld [smem:[#allocation3 + %s30]]
        %p400 = scmp.eq.s32.totalorder %s399, 0
        %s401 = sld [smem:[#allocation4 + %s30]]
        %s402 = scalar_select %p400, %s401, 0
        %s403 = smul.u32 2, %s402
        %p404 = scmp.lt.s32.totalorder %s403, 1
        %s405 = scalar_select %p404, %s403, 1
        %s406 = smul.addr %s405, 8
        %s407 = scalar_lea.vmem %s3, %s406
        %s408 = sld [smem:[#allocation3 + %s30]]
        %p409 = scmp.eq.s32.totalorder %s408, 0
        %s410 = sld [smem:[#allocation4 + %s30]]
        %s411 = scalar_select %p409, %s410, 0
        %s412 = smul.u32 2, %s411
      $region24: #{dice_loss_3.1} parent=15 // pred_fallthru
        _
      // Predicated region
      $region25: #{dice_loss_3.1} parent=15 // pred_check
        %p413 = pneg %p126
      $region26: #{dice_loss_3.1} parent=15 // pred_check_branch
        %415 = sbr.rel (%p413) target = $region28
      $region27: #{dice_loss_3.1} parent=15 // pred_region
        %s416 = sld [smem:[#allocation3 + %s30]]
        %p417 = scmp.eq.s32.totalorder %s416, 1
        %s418 = sld [smem:[#allocation4 + %s30]]
        %s419 = scalar_select %p417, %s418, 0
        %p420 = scmp.lt.s32.totalorder %s419, 0
        %s421 = scalar_select %p420, %s419, 0
        %s422 = smul.addr %s421, 4
        %s423 = scalar_lea.vmem %s4, %s422
        %s424 = sld [smem:[#allocation3 + %s30]]
        %p425 = scmp.eq.s32.totalorder %s424, 1
        %s426 = sld [smem:[#allocation4 + %s30]]
        %s427 = scalar_select %p425, %s426, 0
      $region28: #{dice_loss_3.1} parent=15 // pred_fallthru
        _
      // Predicated region
      $region29: #{dice_loss_3.1} parent=15 // pred_check
        %p428 = pneg %p160
      $region30: #{dice_loss_3.1} parent=15 // pred_check_branch
        %430 = sbr.rel (%p428) target = $region32
      $region31: #{dice_loss_3.1} parent=15 // pred_region
        %s431 = sld [smem:[#allocation3 + %s30]]
        %p432 = scmp.eq.s32.totalorder %s431, 1
        %s433 = sld [smem:[#allocation4 + %s30]]
        %s434 = scalar_select %p432, %s433, 0
        %p435 = scmp.lt.s32.totalorder %s434, 0
        %s436 = scalar_select %p435, %s434, 0
        %s437 = smul.addr %s436, 4
        %s438 = scalar_lea.vmem %s5, %s437
        %s439 = sld [smem:[#allocation3 + %s30]]
        %p440 = scmp.eq.s32.totalorder %s439, 1
        %s441 = sld [smem:[#allocation4 + %s30]]
        %s442 = scalar_select %p440, %s441, 0
      $region32: #{dice_loss_3.1} parent=15 // pred_fallthru
        _
      // Predicated region
      $region33: #{dice_loss_3.1} parent=15 // pred_check
        %p443 = pneg %p194
      $region34: #{dice_loss_3.1} parent=15 // pred_check_branch
        %445 = sbr.rel (%p443) target = $region36
      $region35: #{dice_loss_3.1} parent=15 // pred_region
        %s446 = sld [smem:[#allocation3 + %s30]]
        %p447 = scmp.eq.s32.totalorder %s446, 2
        %s448 = sld [smem:[#allocation4 + %s30]]
        %s449 = scalar_select %p447, %s448, 0
        %s450 = smul.u32 8, %s449
        %p451 = scmp.lt.s32.totalorder %s450, 7
        %s452 = scalar_select %p451, %s450, 7
        %s453 = smul.addr %s452, 8
        %s454 = scalar_lea.vmem %s6, %s453
        %s455 = sld [smem:[#allocation3 + %s30]]
        %p456 = scmp.eq.s32.totalorder %s455, 2
        %s457 = sld [smem:[#allocation4 + %s30]]
        %s458 = scalar_select %p456, %s457, 0
        %s459 = smul.u32 8, %s458
      $region36: #{dice_loss_3.1} parent=15 // pred_fallthru
        _
      // Predicated region
      $region37: #{dice_loss_3.1} parent=15 // pred_check
        %p460 = pneg %p228
      $region38: #{dice_loss_3.1} parent=15 // pred_check_branch
        %462 = sbr.rel (%p460) target = $region40
      $region39: #{dice_loss_3.1} parent=15 // pred_region
        %s463 = sld [smem:[#allocation3 + %s30]]
        %p464 = scmp.eq.s32.totalorder %s463, 2
        %s465 = sld [smem:[#allocation4 + %s30]]
        %s466 = scalar_select %p464, %s465, 0
        %s467 = smul.u32 8, %s466
        %p468 = scmp.lt.s32.totalorder %s467, 7
        %s469 = scalar_select %p468, %s467, 7
        %s470 = smul.addr %s469, 8
        %s471 = scalar_lea.vmem %s7, %s470
        %s472 = sld [smem:[#allocation3 + %s30]]
        %p473 = scmp.eq.s32.totalorder %s472, 2
        %s474 = sld [smem:[#allocation4 + %s30]]
        %s475 = scalar_select %p473, %s474, 0
        %s476 = smul.u32 8, %s475
      $region40: #{dice_loss_3.1} parent=15 // pred_fallthru
        _
    $region16: #{dice_loss_3.1} parent=5 // pred_fallthru
      _
    %p477 = scmp.le.s32.totalorder 1, %s30
    %p478 = scmp.lt.s32.totalorder %s30, 4
    %p479 = pnand %p477, %p478
    %p480 = pneg %p479
    // Predicated region
    $region41: #{dice_loss_3.1} parent=5 // pred_check
      _
    $region42: #{dice_loss_3.1} parent=5 // pred_check_branch
      %482 = sbr.rel (%p479) target = $region44
    $region43: #{dice_loss_3.1} parent=5 // pred_region
      %s483 = ssub.s32 %s30, 1
      %s484 = sld [smem:[#allocation3 + %s35]]
      %p485 = scmp.eq.s32.totalorder %s484, 0
      %s486 = sld [smem:[#allocation4 + %s35]]
      %s487 = scalar_select %p485, %s486, 0
      %s488 = smul.u32 2, %s487
      %p489 = scmp.lt.s32.totalorder %s488, 1
      %s490 = scalar_select %p489, %s488, 1
      %s491 = smul.addr %s490, 8
      %s492 = scalar_lea.vmem %s2, %s491
      %p493 = pneg %p64
      %p494 = pneg %p61
      %s495 = sld [smem:[#allocation3 + %s35]]
      %p496 = scmp.eq.s32.totalorder %s495, 0
      %s497 = sld [smem:[#allocation4 + %s35]]
      %s498 = scalar_select %p496, %s497, 0
      %s499 = smul.u32 2, %s498
      %p500 = scmp.lt.s32.totalorder %s499, 1
      %s501 = scalar_select %p500, %s499, 1
      %s502 = smul.addr %s501, 8
      %s503 = scalar_lea.vmem %s3, %s502
      %p504 = pneg %p98
      %p505 = pneg %p95
      %s506 = sld [smem:[#allocation3 + %s35]]
      %p507 = scmp.eq.s32.totalorder %s506, 1
      %s508 = sld [smem:[#allocation4 + %s35]]
      %s509 = scalar_select %p507, %s508, 0
      %p510 = scmp.lt.s32.totalorder %s509, 0
      %s511 = scalar_select %p510, %s509, 0
      %s512 = smul.addr %s511, 4
      %s513 = scalar_lea.vmem %s4, %s512
      %p514 = pneg %p132
      %p515 = pneg %p129
      %s516 = sld [smem:[#allocation3 + %s35]]
      %p517 = scmp.eq.s32.totalorder %s516, 1
      %s518 = sld [smem:[#allocation4 + %s35]]
      %s519 = scalar_select %p517, %s518, 0
      %p520 = scmp.lt.s32.totalorder %s519, 0
      %s521 = scalar_select %p520, %s519, 0
      %s522 = smul.addr %s521, 4
      %s523 = scalar_lea.vmem %s5, %s522
      %p524 = pneg %p166
      %p525 = pneg %p163
      %s526 = sld [smem:[#allocation3 + %s35]]
      %p527 = scmp.eq.s32.totalorder %s526, 2
      %s528 = sld [smem:[#allocation4 + %s35]]
      %s529 = scalar_select %p527, %s528, 0
      %s530 = smul.u32 8, %s529
      %p531 = scmp.lt.s32.totalorder %s530, 7
      %s532 = scalar_select %p531, %s530, 7
      %s533 = smul.addr %s532, 8
      %s534 = scalar_lea.vmem %s6, %s533
      %p535 = pneg %p200
      %p536 = pneg %p197
      %s537 = sld [smem:[#allocation3 + %s35]]
      %p538 = scmp.eq.s32.totalorder %s537, 2
      %s539 = sld [smem:[#allocation4 + %s35]]
      %s540 = scalar_select %p538, %s539, 0
      %s541 = smul.u32 8, %s540
      %p542 = scmp.lt.s32.totalorder %s541, 7
      %s543 = scalar_select %p542, %s541, 7
      %s544 = smul.addr %s543, 8
      %s545 = scalar_lea.vmem %s7, %s544
      %p546 = pneg %p234
      %p547 = pneg %p231
      %p548 = pneg %p255
      %p549 = pneg %p252
      %p550 = pneg %p276
      %p551 = pneg %p273
      %p552 = pneg %p297
      %p553 = pneg %p294
      %p554 = pneg %p318
      %p555 = pneg %p315
      %p556 = pneg %p339
      %p557 = pneg %p336
      %p558 = pneg %p360
      %p559 = pneg %p357
      %s560 = sld [smem:[#allocation3 + %s35]]
      %p561 = scmp.eq.s32.totalorder %s560, 0
      %s562 = sld [smem:[#allocation4 + %s35]]
      %s563 = scalar_select %p561, %s562, 0
      %s564 = smul.u32 2, %s563
      %p565 = scmp.lt.s32.totalorder %s564, 1
      %s566 = scalar_select %p565, %s564, 1
      %s567 = smul.addr %s566, 8
      %s568 = scalar_lea.vmem %s2, %s567
      %s569 = sld [smem:[#allocation3 + %s35]]
      %p570 = scmp.eq.s32.totalorder %s569, 0
      %s571 = sld [smem:[#allocation4 + %s35]]
      %s572 = scalar_select %p570, %s571, 0
      %s573 = smul.u32 2, %s572
      %s574 = sld [smem:[#allocation3 + %s35]]
      %p575 = scmp.eq.s32.totalorder %s574, 0
      %s576 = sld [smem:[#allocation4 + %s35]]
      %s577 = scalar_select %p575, %s576, 0
      %s578 = smul.u32 2, %s577
      %p579 = scmp.lt.s32.totalorder %s578, 1
      %s580 = scalar_select %p579, %s578, 1
      %s581 = smul.addr %s580, 8
      %s582 = scalar_lea.vmem %s3, %s581
      %s583 = sld [smem:[#allocation3 + %s35]]
      %p584 = scmp.eq.s32.totalorder %s583, 0
      %s585 = sld [smem:[#allocation4 + %s35]]
      %s586 = scalar_select %p584, %s585, 0
      %s587 = smul.u32 2, %s586
      %s588 = sld [smem:[#allocation3 + %s35]]
      %p589 = scmp.eq.s32.totalorder %s588, 1
      %s590 = sld [smem:[#allocation4 + %s35]]
      %s591 = scalar_select %p589, %s590, 0
      %p592 = scmp.lt.s32.totalorder %s591, 0
      %s593 = scalar_select %p592, %s591, 0
      %s594 = smul.addr %s593, 4
      %s595 = scalar_lea.vmem %s4, %s594
      %s596 = sld [smem:[#allocation3 + %s35]]
      %p597 = scmp.eq.s32.totalorder %s596, 1
      %s598 = sld [smem:[#allocation4 + %s35]]
      %s599 = scalar_select %p597, %s598, 0
      %s600 = sld [smem:[#allocation3 + %s35]]
      %p601 = scmp.eq.s32.totalorder %s600, 1
      %s602 = sld [smem:[#allocation4 + %s35]]
      %s603 = scalar_select %p601, %s602, 0
      %p604 = scmp.lt.s32.totalorder %s603, 0
      %s605 = scalar_select %p604, %s603, 0
      %s606 = smul.addr %s605, 4
      %s607 = scalar_lea.vmem %s5, %s606
      %s608 = sld [smem:[#allocation3 + %s35]]
      %p609 = scmp.eq.s32.totalorder %s608, 1
      %s610 = sld [smem:[#allocation4 + %s35]]
      %s611 = scalar_select %p609, %s610, 0
      %s612 = sld [smem:[#allocation3 + %s35]]
      %p613 = scmp.eq.s32.totalorder %s612, 2
      %s614 = sld [smem:[#allocation4 + %s35]]
      %s615 = scalar_select %p613, %s614, 0
      %s616 = smul.u32 8, %s615
      %p617 = scmp.lt.s32.totalorder %s616, 7
      %s618 = scalar_select %p617, %s616, 7
      %s619 = smul.addr %s618, 8
      %s620 = scalar_lea.vmem %s6, %s619
      %s621 = sld [smem:[#allocation3 + %s35]]
      %p622 = scmp.eq.s32.totalorder %s621, 2
      %s623 = sld [smem:[#allocation4 + %s35]]
      %s624 = scalar_select %p622, %s623, 0
      %s625 = smul.u32 8, %s624
      %s626 = sld [smem:[#allocation3 + %s35]]
      %p627 = scmp.eq.s32.totalorder %s626, 2
      %s628 = sld [smem:[#allocation4 + %s35]]
      %s629 = scalar_select %p627, %s628, 0
      %s630 = smul.u32 8, %s629
      %p631 = scmp.lt.s32.totalorder %s630, 7
      %s632 = scalar_select %p631, %s630, 7
      %s633 = smul.addr %s632, 8
      %s634 = scalar_lea.vmem %s7, %s633
      %s635 = sld [smem:[#allocation3 + %s35]]
      %p636 = scmp.eq.s32.totalorder %s635, 2
      %s637 = sld [smem:[#allocation4 + %s35]]
      %s638 = scalar_select %p636, %s637, 0
      %s639 = smul.u32 8, %s638
      %s640 = sld [smem:[#allocation3 + %s35]]
      %p641 = scmp.eq.s32.totalorder %s35, 0
      // Predicated region
      $region45: #{dice_loss_3.1} parent=43 // pred_check
        %p642 = pneg %p641
      $region46: #{dice_loss_3.1} parent=43 // pred_check_branch
        %644 = sbr.rel (%p642) target = $region48
      $region47: #{dice_loss_3.1} parent=43 // pred_region
        %645 = vst [vmem:[%s8] sm:$0x1] 0.0
        %646 = vst [vmem:[%s9] sm:$0x1] 0.0
        %647 = vst [vmem:[%s10] sm:$0x1] 0.0
        %648 = vst [vmem:[%s11] sm:$0x1] 0.0
        %649 = vst [vmem:[%s12] sm:$0x1] 0.0
        %650 = vst [vmem:[%s13] sm:$0x1] 0.0
      $region48: #{dice_loss_3.1} parent=43 // pred_fallthru
        _
      %p651 = scmp.eq.s32.totalorder %s640, 0
      // Predicated region
      $region49: #{dice_loss_3.1} parent=43 // pred_check
        %p652 = pneg %p651
      $region50: #{dice_loss_3.1} parent=43 // pred_check_branch
        %654 = sbr.rel (%p652) target = $region52
      $region51: #{dice_loss_3.1} parent=43 // pred_region
        %v655 = vld [vmem:[%s568] sm:$0xff]
        %v656 = vld [vmem:[%s568 + $0x8] sm:$0xff]
        %v657 = vld [vmem:[%s582] sm:$0xff]
        %v658 = vld [vmem:[%s582 + $0x8] sm:$0xff]
        %v659 = vxor.u32 %v655, 2147483648
        %v660 = vxor.u32 %v656, 2147483648
        %v661 = vmul.f32 %v659, 1.442695
        %v662 = vpow.pop %v661
        %v663 = vmul.f32 %v660, 1.442695
        %v664 = vpow.pop %v663
        %v665 = vadd.f32 %v662, 1.0
        %v666 = vadd.f32 %v664, 1.0
        %v667 = vrcp.pop %v665
        %v668 = vmul.f32 1.0, %v667
        %v669 = vrcp.pop %v666
        %v670 = vmul.f32 1.0, %v669
        %v671 = vld [vmem:[%s8] sm:$0x1]
        %v672 = vmul.f32 %v668, %v657
        %v673 = vmul.f32 %v670, %v658
        %v674 = vadd.f32 %v672, %v673
        %v675 = vrot.slane %v674, 4
        %v676 = vadd.f32 %v674, %v675
        %v677 = vrot.slane %v676, 2
        %v678 = vadd.f32 %v676, %v677
        %v679 = vrot.slane %v678, 1
        %v680 = vadd.f32 %v678, %v679
        %v681 = vadd.f32 %v671, %v680
        %682 = vst [vmem:[%s8] sm:$0x1] %v681
        %v683 = vld [vmem:[%s9] sm:$0x1]
        %v684 = vadd.f32 %v668, %v657
        %v685 = vadd.f32 %v670, %v658
        %v686 = vadd.f32 %v684, %v685
        %v687 = vrot.slane %v686, 4
        %v688 = vadd.f32 %v686, %v687
        %v689 = vrot.slane %v688, 2
        %v690 = vadd.f32 %v688, %v689
        %v691 = vrot.slane %v690, 1
        %v692 = vadd.f32 %v690, %v691
        %v693 = vadd.f32 %v683, %v692
        %694 = vst [vmem:[%s9] sm:$0x1] %v693
      $region52: #{dice_loss_3.1} parent=43 // pred_fallthru
        _
      %p695 = scmp.eq.s32.totalorder %s640, 1
      // Predicated region
      $region53: #{dice_loss_3.1} parent=43 // pred_check
        %p696 = pneg %p695
      $region54: #{dice_loss_3.1} parent=43 // pred_check_branch
        %698 = sbr.rel (%p696) target = $region56
      $region55: #{dice_loss_3.1} parent=43 // pred_region
        %v699 = vld [vmem:[%s595] sm:$0xf]
        %v700 = vld [vmem:[%s607] sm:$0xf]
        %v701 = vxor.u32 %v699, 2147483648
        %v702 = vmul.f32 %v701, 1.442695
        %v703 = vpow.pop %v702
        %v704 = vadd.f32 %v703, 1.0
        %v705 = vrcp.pop %v704
        %v706 = vmul.f32 1.0, %v705
        %v707 = vld [vmem:[%s10] sm:$0x1]
        %v708 = vmul.f32 %v706, %v700
        %vm709 = vcmask 1043456
        %v710 = vsel %vm709, %v708, 0.0
        %v711 = vrot.slane %v710, 4
        %v712 = vadd.f32 %v710, %v711
        %v713 = vrot.slane %v712, 2
        %v714 = vadd.f32 %v712, %v713
        %v715 = vrot.slane %v714, 1
        %v716 = vadd.f32 %v714, %v715
        %v717 = vadd.f32 %v707, %v716
        %718 = vst [vmem:[%s10] sm:$0x1] %v717
        %v719 = vld [vmem:[%s11] sm:$0x1]
        %v720 = vadd.f32 %v706, %v700
        %v721 = vsel %vm709, %v720, 0.0
        %v722 = vrot.slane %v721, 4
        %v723 = vadd.f32 %v721, %v722
        %v724 = vrot.slane %v723, 2
        %v725 = vadd.f32 %v723, %v724
        %v726 = vrot.slane %v725, 1
        %v727 = vadd.f32 %v725, %v726
        %v728 = vadd.f32 %v719, %v727
        %729 = vst [vmem:[%s11] sm:$0x1] %v728
      $region56: #{dice_loss_3.1} parent=43 // pred_fallthru
        _
      %p730 = scmp.eq.s32.totalorder %s640, 2
      // Predicated region
      $region57: #{dice_loss_3.1} parent=43 // pred_check
        %p731 = pneg %p730
      $region58: #{dice_loss_3.1} parent=43 // pred_check_branch
        %733 = sbr.rel (%p731) target = $region60
      $region59: #{dice_loss_3.1} parent=43 // pred_region
        %v734 = vld [vmem:[%s620] sm:$0xff]
        %v735 = vld [vmem:[%s620 + $0x8] sm:$0xff]
        %v736 = vld [vmem:[%s620 + $0x10] sm:$0xff]
        %v737 = vld [vmem:[%s620 + $0x18] sm:$0xff]
        %v738 = vld [vmem:[%s620 + $0x20] sm:$0xff]
        %v739 = vld [vmem:[%s620 + $0x28] sm:$0xff]
        %v740 = vld [vmem:[%s620 + $0x30] sm:$0xff]
        %v741 = vld [vmem:[%s620 + $0x38] sm:$0xff]
        %v742 = vld [vmem:[%s634] sm:$0xff]
        %v743 = vld [vmem:[%s634 + $0x8] sm:$0xff]
        %v744 = vld [vmem:[%s634 + $0x10] sm:$0xff]
        %v745 = vld [vmem:[%s634 + $0x18] sm:$0xff]
        %v746 = vld [vmem:[%s634 + $0x20] sm:$0xff]
        %v747 = vld [vmem:[%s634 + $0x28] sm:$0xff]
        %v748 = vld [vmem:[%s634 + $0x30] sm:$0xff]
        %v749 = vld [vmem:[%s634 + $0x38] sm:$0xff]
        %v750 = vxor.u32 %v734, 2147483648
        %v751 = vxor.u32 %v735, 2147483648
        %v752 = vxor.u32 %v736, 2147483648
        %v753 = vxor.u32 %v737, 2147483648
        %v754 = vxor.u32 %v738, 2147483648
        %v755 = vxor.u32 %v739, 2147483648
        %v756 = vxor.u32 %v740, 2147483648
        %v757 = vxor.u32 %v741, 2147483648
        %v758 = vmul.f32 %v750, 1.442695
        %v759 = vpow.pop %v758
        %v760 = vmul.f32 %v751, 1.442695
        %v761 = vpow.pop %v760
        %v762 = vmul.f32 %v752, 1.442695
        %v763 = vpow.pop %v762
        %v764 = vmul.f32 %v753, 1.442695
        %v765 = vpow.pop %v764
        %v766 = vmul.f32 %v754, 1.442695
        %v767 = vpow.pop %v766
        %v768 = vmul.f32 %v755, 1.442695
        %v769 = vpow.pop %v768
        %v770 = vmul.f32 %v756, 1.442695
        %v771 = vpow.pop %v770
        %v772 = vmul.f32 %v757, 1.442695
        %v773 = vpow.pop %v772
        %v774 = vadd.f32 %v759, 1.0
        %v775 = vadd.f32 %v761, 1.0
        %v776 = vadd.f32 %v763, 1.0
        %v777 = vadd.f32 %v765, 1.0
        %v778 = vadd.f32 %v767, 1.0
        %v779 = vadd.f32 %v769, 1.0
        %v780 = vadd.f32 %v771, 1.0
        %v781 = vadd.f32 %v773, 1.0
        %v782 = vrcp.pop %v774
        %v783 = vmul.f32 1.0, %v782
        %v784 = vrcp.pop %v775
        %v785 = vmul.f32 1.0, %v784
        %v786 = vrcp.pop %v776
        %v787 = vmul.f32 1.0, %v786
        %v788 = vrcp.pop %v777
        %v789 = vmul.f32 1.0, %v788
        %v790 = vrcp.pop %v778
        %v791 = vmul.f32 1.0, %v790
        %v792 = vrcp.pop %v779
        %v793 = vmul.f32 1.0, %v792
        %v794 = vrcp.pop %v780
        %v795 = vmul.f32 1.0, %v794
        %v796 = vrcp.pop %v781
        %v797 = vmul.f32 1.0, %v796
        %v798 = vld [vmem:[%s12] sm:$0x1]
        %v799 = vmul.f32 %v783, %v742
        %v800 = vmul.f32 %v785, %v743
        %v801 = vmul.f32 %v787, %v744
        %v802 = vmul.f32 %v789, %v745
        %v803 = vmul.f32 %v791, %v746
        %v804 = vmul.f32 %v793, %v747
        %v805 = vmul.f32 %v795, %v748
        %v806 = vmul.f32 %v797, %v749
        %v807 = vadd.f32 %v799, %v800
        %v808 = vadd.f32 %v807, %v801
        %v809 = vadd.f32 %v808, %v802
        %v810 = vadd.f32 %v809, %v803
        %v811 = vadd.f32 %v810, %v804
        %v812 = vadd.f32 %v811, %v805
        %v813 = vadd.f32 %v812, %v806
        %v814 = vrot.slane %v813, 4
        %v815 = vadd.f32 %v813, %v814
        %v816 = vrot.slane %v815, 2
        %v817 = vadd.f32 %v815, %v816
        %v818 = vrot.slane %v817, 1
        %v819 = vadd.f32 %v817, %v818
        %v820 = vadd.f32 %v798, %v819
        %821 = vst [vmem:[%s12] sm:$0x1] %v820
        %v822 = vld [vmem:[%s13] sm:$0x1]
        %v823 = vadd.f32 %v783, %v742
        %v824 = vadd.f32 %v785, %v743
        %v825 = vadd.f32 %v787, %v744
        %v826 = vadd.f32 %v789, %v745
        %v827 = vadd.f32 %v791, %v746
        %v828 = vadd.f32 %v793, %v747
        %v829 = vadd.f32 %v795, %v748
        %v830 = vadd.f32 %v797, %v749
        %v831 = vadd.f32 %v823, %v824
        %v832 = vadd.f32 %v831, %v825
        %v833 = vadd.f32 %v832, %v826
        %v834 = vadd.f32 %v833, %v827
        %v835 = vadd.f32 %v834, %v828
        %v836 = vadd.f32 %v835, %v829
        %v837 = vadd.f32 %v836, %v830
        %v838 = vrot.slane %v837, 4
        %v839 = vadd.f32 %v837, %v838
        %v840 = vrot.slane %v839, 2
        %v841 = vadd.f32 %v839, %v840
        %v842 = vrot.slane %v841, 1
        %v843 = vadd.f32 %v841, %v842
        %v844 = vadd.f32 %v822, %v843
        %845 = vst [vmem:[%s13] sm:$0x1] %v844
      $region60: #{dice_loss_3.1} parent=43 // pred_fallthru
        _
      // Predicated region
      $region61: #{dice_loss_3.1} parent=43 // pred_check
        %p846 = pneg %p252
      $region62: #{dice_loss_3.1} parent=43 // pred_check_branch
        %848 = sbr.rel (%p846) target = $region64
      $region63: #{dice_loss_3.1} parent=43 // pred_region
        _
      $region64: #{dice_loss_3.1} parent=43 // pred_fallthru
        _
      // Predicated region
      $region65: #{dice_loss_3.1} parent=43 // pred_check
        %p849 = pneg %p273
      $region66: #{dice_loss_3.1} parent=43 // pred_check_branch
        %851 = sbr.rel (%p849) target = $region68
      $region67: #{dice_loss_3.1} parent=43 // pred_region
        _
      $region68: #{dice_loss_3.1} parent=43 // pred_fallthru
        _
      // Predicated region
      $region69: #{dice_loss_3.1} parent=43 // pred_check
        %p852 = pneg %p294
      $region70: #{dice_loss_3.1} parent=43 // pred_check_branch
        %854 = sbr.rel (%p852) target = $region72
      $region71: #{dice_loss_3.1} parent=43 // pred_region
        _
      $region72: #{dice_loss_3.1} parent=43 // pred_fallthru
        _
      // Predicated region
      $region73: #{dice_loss_3.1} parent=43 // pred_check
        %p855 = pneg %p315
      $region74: #{dice_loss_3.1} parent=43 // pred_check_branch
        %857 = sbr.rel (%p855) target = $region76
      $region75: #{dice_loss_3.1} parent=43 // pred_region
        _
      $region76: #{dice_loss_3.1} parent=43 // pred_fallthru
        _
      // Predicated region
      $region77: #{dice_loss_3.1} parent=43 // pred_check
        %p858 = pneg %p336
      $region78: #{dice_loss_3.1} parent=43 // pred_check_branch
        %860 = sbr.rel (%p858) target = $region80
      $region79: #{dice_loss_3.1} parent=43 // pred_region
        _
      $region80: #{dice_loss_3.1} parent=43 // pred_fallthru
        _
      // Predicated region
      $region81: #{dice_loss_3.1} parent=43 // pred_check
        %p861 = pneg %p357
      $region82: #{dice_loss_3.1} parent=43 // pred_check_branch
        %863 = sbr.rel (%p861) target = $region84
      $region83: #{dice_loss_3.1} parent=43 // pred_region
        _
      $region84: #{dice_loss_3.1} parent=43 // pred_fallthru
        _
      // Predicated region
      $region85: #{dice_loss_3.1} parent=43 // pred_check
        %p864 = pneg %p252
      $region86: #{dice_loss_3.1} parent=43 // pred_check_branch
        %866 = sbr.rel (%p864) target = $region88
      $region87: #{dice_loss_3.1} parent=43 // pred_region
        _
      $region88: #{dice_loss_3.1} parent=43 // pred_fallthru
        _
      // Predicated region
      $region89: #{dice_loss_3.1} parent=43 // pred_check
        %p867 = pneg %p273
      $region90: #{dice_loss_3.1} parent=43 // pred_check_branch
        %869 = sbr.rel (%p867) target = $region92
      $region91: #{dice_loss_3.1} parent=43 // pred_region
        _
      $region92: #{dice_loss_3.1} parent=43 // pred_fallthru
        _
      // Predicated region
      $region93: #{dice_loss_3.1} parent=43 // pred_check
        %p870 = pneg %p294
      $region94: #{dice_loss_3.1} parent=43 // pred_check_branch
        %872 = sbr.rel (%p870) target = $region96
      $region95: #{dice_loss_3.1} parent=43 // pred_region
        _
      $region96: #{dice_loss_3.1} parent=43 // pred_fallthru
        _
      // Predicated region
      $region97: #{dice_loss_3.1} parent=43 // pred_check
        %p873 = pneg %p315
      $region98: #{dice_loss_3.1} parent=43 // pred_check_branch
        %875 = sbr.rel (%p873) target = $region100
      $region99: #{dice_loss_3.1} parent=43 // pred_region
        _
      $region100: #{dice_loss_3.1} parent=43 // pred_fallthru
        _
      // Predicated region
      $region101: #{dice_loss_3.1} parent=43 // pred_check
        %p876 = pneg %p336
      $region102: #{dice_loss_3.1} parent=43 // pred_check_branch
        %878 = sbr.rel (%p876) target = $region104
      $region103: #{dice_loss_3.1} parent=43 // pred_region
        _
      $region104: #{dice_loss_3.1} parent=43 // pred_fallthru
        _
      // Predicated region
      $region105: #{dice_loss_3.1} parent=43 // pred_check
        %p879 = pneg %p357
      $region106: #{dice_loss_3.1} parent=43 // pred_check_branch
        %881 = sbr.rel (%p879) target = $region108
      $region107: #{dice_loss_3.1} parent=43 // pred_region
        _
      $region108: #{dice_loss_3.1} parent=43 // pred_fallthru
        _
    $region44: #{dice_loss_3.1} parent=5 // pred_fallthru
      _
    %p882 = scmp.le.s32.totalorder 2, %s30
    // Predicated region
    $region109: #{dice_loss_3.1} parent=5 // pred_check
      %p883 = pneg %p882
    $region110: #{dice_loss_3.1} parent=5 // pred_check_branch
      %885 = sbr.rel (%p883) target = $region112
    $region111: #{dice_loss_3.1} parent=5 // pred_region
      %s886 = ssub.s32 %s30, 2
    $region112: #{dice_loss_3.1} parent=5 // pred_fallthru
      _
  $region6: #{dice_loss_3.1} parent=0 // loop_footer
    %s34 = sadd.s32 1, %s30
  $region7: #{dice_loss_3.1} parent=0 // loop_footer_branch
    %29 = sbr.rel target = $region3
  $region8: #{dice_loss_3.1} parent=0 // loop_exit
    _

</llo_original>
